<compile_context>
chip_gen: v7x
topology: tpu7x:2x2x1
jax: 0.10.0
libtpu: 0.0.40
codegen_flags: <defaults>
</compile_context>

<pallas_src>
import functools

import jax
import jax.numpy as jnp
from jax.experimental import pallas as pl
from jax.experimental.pallas import tpu as pltpu

LEAKY_SLOPE = 0.01   # nn.LeakyReLU default negative_slope
LATENT_DIM = 32      # fixed by the PyTorch module
OUT_LANES = 128      # lane-dense output / blob width


def _leaky_relu(x):
    # max(x, a*x) == LeakyReLU(x) for 0 < a < 1 — drops the compare op.
    return jnp.maximum(x, LEAKY_SLOPE * x)


def _align(n, m):
    return (n + m - 1) // m * m


def _blob_layout(state_dim, hidden_dim, latent_dim, out_pad):
    """8-aligned row offsets of every parameter section in the packed blob."""
    r_w1 = 0
    r_b1 = _align(r_w1 + state_dim, 8)
    r_w2 = _align(r_b1 + 1, 8)
    r_b2 = _align(r_w2 + hidden_dim, 8)
    r_wh = _align(r_b2 + 1, 8)
    r_bh = _align(r_wh + latent_dim + state_dim, 8)
    rows = _align(r_bh + 1, 8)
    cols = _align(max(hidden_dim, latent_dim, out_pad, OUT_LANES), 128)
    return dict(r_w1=r_w1, r_b1=r_b1, r_w2=r_w2, r_b2=r_b2,
                r_wh=r_wh, r_bh=r_bh, rows=rows, cols=cols)


def pack_actor_params(params):
    """Pack all Actor parameters into one f32 (rows, 128) blob.

    Call this ONCE per parameter update (not per forward).  The head weights
    are pre-fused:  [latent | x] @ [[Wd, Wc], [0, Wp]]  with one bias row
    [bd | bc + bp].  Zero-padded columns up to 128 lanes give a lane-dense
    output slab.  The frozen-zero passthrough (Wp / bp) is kept inside the
    fused weights, so semantics are preserved even if it is ever unfrozen —
    just re-pack whenever params change.
    """
    w1, b1 = params["w1"], params["b1"]
    w2, b2 = params["w2"], params["b2"]
    wd, bd = params["wd"], params["bd"]
    wc, bc = params["wc"], params["bc"]
    wp, bp = params["wp"], params["bp"]

    S, H = w1.shape
    L = w2.shape[1]
    Dd = wd.shape[1]
    Dc = wc.shape[1]
    out_pad = _align(Dd + Dc, OUT_LANES)
    lay = _blob_layout(S, H, L, out_pad)

    wh = jnp.zeros((L + S, out_pad), jnp.float32)
    wh = wh.at[:L, :Dd].set(wd)
    wh = wh.at[:L, Dd:Dd + Dc].set(wc)
    wh = wh.at[L:, Dd:Dd + Dc].set(wp)
    bh = jnp.zeros((out_pad,), jnp.float32)
    bh = bh.at[:Dd].set(bd[0])
    bh = bh.at[Dd:Dd + Dc].set(bc[0] + bp[0])

    blob = jnp.zeros((lay["rows"], lay["cols"]), jnp.float32)
    blob = blob.at[lay["r_w1"]:lay["r_w1"] + S, :H].set(w1)
    blob = blob.at[lay["r_b1"], :H].set(b1[0])
    blob = blob.at[lay["r_w2"]:lay["r_w2"] + H, :L].set(w2)
    blob = blob.at[lay["r_b2"], :L].set(b2[0])
    blob = blob.at[lay["r_wh"]:lay["r_wh"] + L + S, :out_pad].set(wh)
    blob = blob.at[lay["r_bh"], :out_pad].set(bh)

    dims = dict(S=S, H=H, L=L, Dd=Dd, Dc=Dc, out_pad=out_pad)
    return blob, lay, dims


def _actor_kernel(x_ref, blob_ref, out_ref, *, lay, dims):
    S, H, L = dims["S"], dims["H"], dims["L"]
    Dd, Np = dims["Dd"], dims["out_pad"]

    x = x_ref[...]                                                   # (tb, S)

    # Trunk: Linear -> LeakyReLU -> Linear -> LeakyReLU
    w1 = blob_ref[lay["r_w1"]:lay["r_w1"] + S, :H]
    b1 = blob_ref[lay["r_b1"]:lay["r_b1"] + 1, :H]
    h = _leaky_relu(jnp.dot(x, w1, preferred_element_type=jnp.float32) + b1)

    w2 = blob_ref[lay["r_w2"]:lay["r_w2"] + H, :L]
    b2 = blob_ref[lay["r_b2"]:lay["r_b2"] + 1, :L]
    latent = _leaky_relu(jnp.dot(h, w2, preferred_element_type=jnp.float32) + b2)

    # Fused heads as two small matmuls summed (no lane-axis concat/relayout):
    #   [latent | x] @ [[Wd, Wc], [0, Wp]]  ==  latent @ wh_lat  +  x @ wh_x
    wh_lat = blob_ref[lay["r_wh"]:lay["r_wh"] + L, :Np]
    wh_x = blob_ref[lay["r_wh"] + L:lay["r_wh"] + L + S, :Np]
    bh = blob_ref[lay["r_bh"]:lay["r_bh"] + 1, :Np]
    head = (jnp.dot(latent, wh_lat, preferred_element_type=jnp.float32)
            + jnp.dot(x, wh_x, preferred_element_type=jnp.float32)
            + bh)

    # Batch-invariant (1, Np) column mask; broadcasts down the tile rows.
    # tanh only the continuous columns (>= Dd); discrete Q-values untouched.
    col = jax.lax.broadcasted_iota(jnp.int32, (1, Np), 1)
    out_ref[...] = jnp.where(col >= Dd, jnp.tanh(head), head).astype(out_ref.dtype)


def _choose_tile(batch, tile_b, max_tile, min_grid):
    """Pick (padded_batch, tile) — big tiles amortize per-grid-step overhead,
    but keep >= min_grid steps when the batch allows so v7x's two TensorCores
    both get work.  VMEM never binds here (~1.2 KiB/row double-buffered)."""
    bp = _align(max(batch, 1), 8)
    if tile_b is not None:
        tb = max(8, min(_align(tile_b, 8), bp))
    else:
        tb = max(8, min(max_tile, _align(pl.cdiv(bp, min_grid), 8)))
    bp = _align(bp, tb)
    return bp, tb


def actor_forward_slab(x, blob, lay, dims, *, tile_b=None, max_tile=2048,
                       min_grid=2, out_dtype=jnp.float32):
    """Fused Actor forward.  Returns the lane-dense padded output slab of
    shape (padded_batch, 128) = [discrete_qs | continuous | 0-pad].
    Latency-critical consumers should use this directly (no re-slice pass)."""
    B, S = x.shape
    assert S == dims["S"], "state_dim mismatch with packed params"
    H, L, Np = dims["H"], dims["L"], dims["out_pad"]

    bp, tb = _choose_tile(B, tile_b, max_tile, min_grid)
    if bp != B:
        x = jnp.pad(x, ((0, bp - B), (0, 0)))

    cost = pl.CostEstimate(
        flops=2 * bp * (S * H + H * L + (L + S) * Np),
        transcendentals=bp * Np,
        bytes_accessed=bp * (S + Np) * 4 + blob.size * 4,
    )

    return pl.pallas_call(
        functools.partial(_actor_kernel, lay=lay, dims=dims),
        out_shape=jax.ShapeDtypeStruct((bp, Np), out_dtype),
        grid=(bp // tb,),
        in_specs=[
            pl.BlockSpec((tb, S), lambda i: (i, 0)),                     # batch-tiled x
            pl.BlockSpec((lay["rows"], lay["cols"]), lambda i: (0, 0)),  # resident params
        ],
        out_specs=pl.BlockSpec((tb, Np), lambda i: (i, 0)),
        compiler_params=pltpu.CompilerParams(
            dimension_semantics=("parallel",)),
        cost_estimate=cost,
    )(x, blob)


def actor_forward(x, blob, lay, dims, **kw):
    """Convenience wrapper: slices (discrete_qs, continuous) out of the slab."""
    B = x.shape[0]
    Dd, Dc = dims["Dd"], dims["Dc"]
    slab = actor_forward_slab(x, blob, lay, dims, **kw)
    return slab[:B, :Dd], slab[:B, Dd:Dd + Dc]


def init_actor_params(key, state_dim, discrete_dim, continuous_dim, hidden_dim=64):
    """Deterministic synthetic init (PyTorch-style uniform ranges), weights as (in, out)."""
    latent_dim = LATENT_DIM

    def linear(key, fan_in, fan_out):
        kw, kb = jax.random.split(key)
        bound = 1.0 / jnp.sqrt(fan_in)
        w = jax.random.uniform(kw, (fan_in, fan_out), jnp.float32, -bound, bound)
        b = jax.random.uniform(kb, (1, fan_out), jnp.float32, -bound, bound)
        return w, b

    k1, k2, k3, k4 = jax.random.split(key, 4)
    w1, b1 = linear(k1, state_dim, hidden_dim)
    w2, b2 = linear(k2, hidden_dim, latent_dim)
    wd, bd = linear(k3, latent_dim, discrete_dim)
    wc, bc = linear(k4, latent_dim, continuous_dim)
    # continuous_passthrough_layer: zero-initialized, frozen
    wp = jnp.zeros((state_dim, continuous_dim), jnp.float32)
    bp = jnp.zeros((1, continuous_dim), jnp.float32)
    return dict(w1=w1, b1=b1, w2=w2, b2=b2, wd=wd, bd=bd, wc=wc, bc=bc, wp=wp, bp=bp)


def actor_forward_ref(x, p):
    """Pure-JAX reference for correctness check."""
    def lrelu(v):
        return jnp.where(v > 0, v, LEAKY_SLOPE * v)
    h = lrelu(x @ p["w1"] + p["b1"])
    latent = lrelu(h @ p["w2"] + p["b2"])
    dq = latent @ p["wd"] + p["bd"]
    cont = jnp.tanh(latent @ p["wc"] + p["bc"] + x @ p["wp"] + p["bp"])
    return dq, cont


if __name__ == "__main__":
    key = jax.random.PRNGKey(0)
    kx, kp = jax.random.split(key)

    batch = 8
    state_dim = 16
    discrete_dim = 8
    continuous_dim = 4
    hidden_dim = 64

    x = jax.random.normal(kx, (batch, state_dim), jnp.float32)
    params = init_actor_params(kp, state_dim, discrete_dim, continuous_dim, hidden_dim)

    # Pack ONCE (hoisted out of the forward path); re-pack only when params change.
    blob, lay, dims = pack_actor_params(params)
    blob = jax.block_until_ready(blob)

    # Jitted forward with the packed blob as an argument (lay/dims are static).
    fwd = jax.jit(functools.partial(actor_forward, lay=lay, dims=dims))

    dq, cont = fwd(x, blob)
    jax.block_until_ready((dq, cont))

    dq_ref, cont_ref = actor_forward_ref(x, params)
    assert dq.shape == (batch, discrete_dim)
    assert cont.shape == (batch, continuous_dim)
    assert jnp.allclose(dq, dq_ref, atol=1e-5, rtol=1e-5)
    assert jnp.allclose(cont, cont_ref, atol=1e-5, rtol=1e-5)

    # Larger, non-multiple-of-8 batch exercises the padded auto-tiled grid
    # (auto tile keeps >= 2 grid steps -> both v7x TensorCores busy).
    xb = jax.random.normal(kx, (300, state_dim), jnp.float32)
    dq_b, cont_b = fwd(xb, blob)
    jax.block_until_ready((dq_b, cont_b))
    dq_b_ref, cont_b_ref = actor_forward_ref(xb, params)
    assert dq_b.shape == (300, discrete_dim)
    assert cont_b.shape == (300, continuous_dim)
    assert jnp.allclose(dq_b, dq_b_ref, atol=1e-4, rtol=1e-4)
    assert jnp.allclose(cont_b, cont_b_ref, atol=1e-4, rtol=1e-4)

    # Lane-dense slab path (no wrapper re-slice) — what hot-path consumers use.
    slab = actor_forward_slab(xb, blob, lay, dims)
    jax.block_until_ready(slab)
    assert jnp.allclose(slab[:300, :discrete_dim], dq_b_ref, atol=1e-4, rtol=1e-4)

    print("KERNEL_OK")
</pallas_src>

<mosaic_0001>
module attributes {stable_mosaic.version = 11 : i64} {
  func.func @_actor_kernel(%arg0: i32, %arg1: memref<8x16xf32, #tpu.memory_space<vmem>>, %arg2: memref<152x128xf32, #tpu.memory_space<vmem>>, %arg3: memref<8x128xf32, #tpu.memory_space<vmem>>) attributes {dimension_semantics = [#tpu.dimension_semantics<parallel>], iteration_bounds = array<i64: 1>, scalar_prefetch = 0 : i64, scratch_operands = 0 : i64, tpu.core_type = #tpu.core_type<tc>, window_params = [{transform_indices = @transform_0, window_bounds = array<i64: 8, 16>}, {pipeline_mode = #tpu.pipeline_mode<synchronous>, transform_indices = @transform_1, window_bounds = array<i64: 152, 128>}, {transform_indices = @transform_2, window_bounds = array<i64: 8, 128>}]} {
    %c0 = arith.constant 0 : index
    %c0_0 = arith.constant 0 : index
    %0 = vector.load %arg1[%c0, %c0_0] : memref<8x16xf32, #tpu.memory_space<vmem>>, vector<8x16xf32>
    %c0_1 = arith.constant 0 : index
    %c0_2 = arith.constant 0 : index
    %1 = vector.load %arg2[%c0_1, %c0_2] : memref<152x128xf32, #tpu.memory_space<vmem>>, vector<16x64xf32>
    %c16 = arith.constant 16 : index
    %c0_3 = arith.constant 0 : index
    %2 = vector.load %arg2[%c16, %c0_3] : memref<152x128xf32, #tpu.memory_space<vmem>>, vector<1x64xf32>
    %cst = arith.constant dense<0.000000e+00> : vector<8x64xf32>
    %3 = tpu.matmul %0, %1, %cst {dimension_numbers = #tpu.dot_dimension_numbers<[1], [0], [0], [1], [0, 0, 1, 1], [], []>} : vector<8x16xf32>, vector<16x64xf32>, vector<8x64xf32> -> vector<8x64xf32>
    %4 = vector.broadcast %2 : vector<1x64xf32> to vector<8x64xf32>
    %5 = arith.addf %3, %4 : vector<8x64xf32>
    %cst_4 = arith.constant 0.00999999977 : f32
    %6 = vector.broadcast %cst_4 : f32 to vector<8x64xf32>
    %7 = arith.mulf %6, %5 : vector<8x64xf32>
    %8 = arith.maximumf %5, %7 : vector<8x64xf32>
    %c24 = arith.constant 24 : index
    %c0_5 = arith.constant 0 : index
    %9 = vector.load %arg2[%c24, %c0_5] : memref<152x128xf32, #tpu.memory_space<vmem>>, vector<64x32xf32>
    %c88 = arith.constant 88 : index
    %c0_6 = arith.constant 0 : index
    %10 = vector.load %arg2[%c88, %c0_6] : memref<152x128xf32, #tpu.memory_space<vmem>>, vector<1x32xf32>
    %cst_7 = arith.constant dense<0.000000e+00> : vector<8x32xf32>
    %11 = tpu.matmul %8, %9, %cst_7 {dimension_numbers = #tpu.dot_dimension_numbers<[1], [0], [0], [1], [0, 0, 1, 1], [], []>} : vector<8x64xf32>, vector<64x32xf32>, vector<8x32xf32> -> vector<8x32xf32>
    %12 = vector.broadcast %10 : vector<1x32xf32> to vector<8x32xf32>
    %13 = arith.addf %11, %12 : vector<8x32xf32>
    %cst_8 = arith.constant 0.00999999977 : f32
    %14 = vector.broadcast %cst_8 : f32 to vector<8x32xf32>
    %15 = arith.mulf %14, %13 : vector<8x32xf32>
    %16 = arith.maximumf %13, %15 : vector<8x32xf32>
    %c96 = arith.constant 96 : index
    %c0_9 = arith.constant 0 : index
    %17 = vector.load %arg2[%c96, %c0_9] : memref<152x128xf32, #tpu.memory_space<vmem>>, vector<32x128xf32>
    %c128 = arith.constant 128 : index
    %c0_10 = arith.constant 0 : index
    %18 = vector.load %arg2[%c128, %c0_10] : memref<152x128xf32, #tpu.memory_space<vmem>>, vector<16x128xf32>
    %c144 = arith.constant 144 : index
    %c0_11 = arith.constant 0 : index
    %19 = vector.load %arg2[%c144, %c0_11] : memref<152x128xf32, #tpu.memory_space<vmem>>, vector<1x128xf32>
    %cst_12 = arith.constant dense<0.000000e+00> : vector<8x128xf32>
    %20 = tpu.matmul %16, %17, %cst_12 {dimension_numbers = #tpu.dot_dimension_numbers<[1], [0], [0], [1], [0, 0, 1, 1], [], []>} : vector<8x32xf32>, vector<32x128xf32>, vector<8x128xf32> -> vector<8x128xf32>
    %cst_13 = arith.constant dense<0.000000e+00> : vector<8x128xf32>
    %21 = tpu.matmul %0, %18, %cst_13 {dimension_numbers = #tpu.dot_dimension_numbers<[1], [0], [0], [1], [0, 0, 1, 1], [], []>} : vector<8x16xf32>, vector<16x128xf32>, vector<8x128xf32> -> vector<8x128xf32>
    %22 = arith.addf %20, %21 : vector<8x128xf32>
    %23 = vector.broadcast %19 : vector<1x128xf32> to vector<8x128xf32>
    %24 = arith.addf %22, %23 : vector<8x128xf32>
    %25 = tpu.iota {dimensions = array<i32: 1>} : vector<1x128xi32>
    %c8_i32 = arith.constant 8 : i32
    %26 = vector.broadcast %c8_i32 : i32 to vector<1x128xi32>
    %27 = arith.cmpi sge, %25, %26 : vector<1x128xi32>
    %28 = math.tanh %24 : vector<8x128xf32>
    %29 = vector.shape_cast %27 : vector<1x128xi1> to vector<1x128xi1>
    %30 = vector.broadcast %29 : vector<1x128xi1> to vector<8x128xi1>
    %31 = arith.select %30, %28, %24 : vector<8x128xi1>, vector<8x128xf32>
    %c0_14 = arith.constant 0 : index
    %c0_15 = arith.constant 0 : index
    %32 = vector.load %arg3[%c0_14, %c0_15] : memref<8x128xf32, #tpu.memory_space<vmem>>, vector<8x128xf32>
    tpu.vector_store %arg3[%c0_14, %c0_15], %31 {strides = array<i32>} : memref<8x128xf32, #tpu.memory_space<vmem>>, vector<8x128xf32>,
    return
  }
  func.func @transform_0(%arg0: i32) -> (i32, i32) {
    %c0_i32 = arith.constant 0 : i32
    %c0_i32_0 = arith.constant 0 : i32
    return %arg0, %c0_i32 : i32, i32
  }
  func.func @transform_1(%arg0: i32) -> (i32, i32) {
    %c0_i32 = arith.constant 0 : i32
    %c0_i32_0 = arith.constant 0 : i32
    %c0_i32_1 = arith.constant 0 : i32
    return %c0_i32, %c0_i32_0 : i32, i32
  }
  func.func @transform_2(%arg0: i32) -> (i32, i32) {
    %c0_i32 = arith.constant 0 : i32
    %c0_i32_0 = arith.constant 0 : i32
    return %arg0, %c0_i32 : i32, i32
  }
}

</mosaic_0001>

<llo_original>
// kernel: actor_forward.1
$region0: #{actor_forward.1}
  #allocation0 [shape = 'u32[]', space=smem, size = 0x4, offset = 0x4, fixed_abs, tag = 'smem constant byte address 0x4 - core index']
  #allocation1 [shape = 'u32[144,128]{1,0:T(1,128)}', space=vmem, size = 0x12000, scoped, tag = 'internal scratch']
  %s0 = inlined_call_operand.hbm [shape: f32[8,16], index: 0, kind: input, shape index: {}]
  %s1 = inlined_call_operand.hbm [shape: f32[152,128], index: 1, kind: input, shape index: {}]
  %s2 = inlined_call_operand.vmem [shape: f32[8,128], index: 2, kind: output, shape index: {}]
  %s3 = sld [smem:[#allocation0]]
  $region26: #{actor_forward.1} parent=0
    _
  %s5 = ssub.s32 1, %s3
  %s6 = scalar_select 0, %s5, %s3
  $region1: #{actor_forward.1} parent=0
    #allocation2 [shape = 'u8[4096]{0}', space=vmem, size = 0x1000, scoped, tag = 'input window, operand 0, single buffered']
    #allocation3 [shape = 's32[1]{0}', space=sflag, size = 0x4, scoped, tag = 'scoped memory for actor_forward.1']
    #allocation4 [shape = 'u8[77824]{0}', space=vmem, size = 0x13000, scoped, tag = 'input window, operand 1, single buffered']
    #allocation5 [shape = 's32[1]{0}', space=sflag, size = 0x4, scoped, tag = 'scoped memory for actor_forward.1']
    %7 = vsyncpa [#allocation3], 0
    %8 = vsyncpa [#allocation5], 0
    // Predicated region
    $region2: #{actor_forward.1} parent=1 // pred_check
      _
    $region3: #{actor_forward.1} parent=1 // pred_check_branch
      %10 = sbr.rel (0) target = $region5
    $region4: #{actor_forward.1} parent=1 // pred_region
      %s12 = ssub.s32 128, 128
      %13 = vsyncadd [#allocation3], %s12
      %s15 = sshll.u32 [#allocation2], 4
      %s16 = int_to_ptr.vmem [resolvable:$true] %s15
      %18 = dma.hbm_to_vmem [thread:$0]  %s0, 128, %s16, [#allocation3]
    $region5: #{actor_forward.1} parent=1 // pred_fallthru
      _
    // Predicated region
    $region6: #{actor_forward.1} parent=1 // pred_check
      _
    $region7: #{actor_forward.1} parent=1 // pred_check_branch
      %20 = sbr.rel (0) target = $region9
    $region8: #{actor_forward.1} parent=1 // pred_region
      %s22 = ssub.s32 2432, 2432
      %23 = vsyncadd [#allocation5], %s22
      %s24 = sshll.u32 [#allocation4], 4
      %s25 = int_to_ptr.vmem [resolvable:$true] %s24
      %30 = dma.hbm_to_vmem [thread:$0]  %s1, 2432, %s25, [#allocation5], 128, 128, 8
    $region9: #{actor_forward.1} parent=1 // pred_fallthru
      _
    // Predicated region
    $region10: #{actor_forward.1} parent=1 // pred_check
      _
    $region11: #{actor_forward.1} parent=1 // pred_check_branch
      %32 = sbr.rel (0) target = $region13
    $region12: #{actor_forward.1} parent=1 // pred_region
      %33 = dma.done [#allocation3], 128
    $region13: #{actor_forward.1} parent=1 // pred_fallthru
      _
    // Predicated region
    $region14: #{actor_forward.1} parent=1 // pred_check
      _
    $region15: #{actor_forward.1} parent=1 // pred_check_branch
      %35 = sbr.rel (0) target = $region17
    $region16: #{actor_forward.1} parent=1 // pred_region
      %36 = dma.done [#allocation5], 2432
    $region17: #{actor_forward.1} parent=1 // pred_fallthru
      _
    %v37 = vld [vmem:[#allocation2] sm:$0xff]
    %v38 = vld [vmem:[#allocation4] sm:$0xff]
    %v39 = vld [vmem:[#allocation4 + $0x8] sm:$0xff]
    %v40 = vld [vmem:[#allocation4 + $0x10] sm:$0x1]
    %v41 = vlaneseq
    %v42 = vshrl.u32 %v41, 7
    %v43 = vsub.s32 0, %v42
    %v44 = vrot.slane %v40, %v43
    %vm45 = vcmask 130048
    %v47 = vsel %vm45, %v37, 0
    %49 = vmatprep.subr.mxu0 0.0
    %50 = vmatpush1.msra.mxu0 %v38
    %51 = vmatprep.subr.mxu0 0.0
    %52 = vmatpush1.msra.mxu0 %v39
    %53 = vmatprep.subr.mxu0 0.0
    %54 = vmatpush1.msra.mxu0 0.0
    %55 = vmatprep.subr.mxu0 0.0
    %56 = vmatpush1.msra.mxu0 0.0
    %57 = vmatprep.subr.mxu0 0.0
    %58 = vmatpush1.msra.mxu0 0.0
    %59 = vmatprep.subr.mxu0 0.0
    %60 = vmatpush1.msra.mxu0 0.0
    %61 = vmatprep.subr.mxu0 0.0
    %62 = vmatpush1.msra.mxu0 0.0
    %63 = vmatprep.subr.mxu0 0.0
    %64 = vmatpush1.msra.mxu0 0.0
    %65 = vmatprep.subr.mxu0 0.0
    %66 = vmatpush1.msra.mxu0 0.0
    %67 = vmatprep.subr.mxu0 0.0
    %68 = vmatpush1.msra.mxu0 0.0
    %69 = vmatprep.subr.mxu0 0.0
    %70 = vmatpush1.msra.mxu0 0.0
    %71 = vmatprep.subr.mxu0 0.0
    %72 = vmatpush1.msra.mxu0 0.0
    %73 = vmatprep.subr.mxu0 0.0
    %74 = vmatpush1.msra.mxu0 0.0
    %75 = vmatprep.subr.mxu0 0.0
    %76 = vmatpush1.msra.mxu0 0.0
    %77 = vmatprep.subr.mxu0 0.0
    %78 = vmatpush1.msra.mxu0 0.0
    %79 = vmatprep.subr.mxu0 0.0
    %80 = vmatpush1.msra.mxu0 0.0
    %81 = vmatprep.subr.mxu0 0.0
    %82 = vmatpush1.msra.mxu0 0.0
    %83 = vmatprep.subr.mxu0 0.0
    %84 = vmatpush1.msra.mxu0 0.0
    %85 = vmatprep.subr.mxu0 0.0
    %86 = vmatpush1.msra.mxu0 0.0
    %87 = vmatprep.subr.mxu0 0.0
    %88 = vmatpush1.msra.mxu0 0.0
    %89 = vmatprep.subr.mxu0 0.0
    %90 = vmatpush1.msra.mxu0 0.0
    %91 = vmatprep.subr.mxu0 0.0
    %92 = vmatpush1.msra.mxu0 0.0
    %93 = vmatprep.subr.mxu0 0.0
    %94 = vmatpush1.msra.mxu0 0.0
    %95 = vmatprep.subr.mxu0 0.0
    %96 = vmatpush1.msra.mxu0 0.0
    %97 = vmatprep.subr.mxu0 0.0
    %98 = vmatpush1.msra.mxu0 0.0
    %99 = vmatprep.subr.mxu0 0.0
    %100 = vmatpush1.msra.mxu0 0.0
    %101 = vmatprep.subr.mxu0 0.0
    %102 = vmatpush1.msra.mxu0 0.0
    %103 = vmatprep.subr.mxu0 0.0
    %104 = vmatpush1.msra.mxu0 0.0
    %105 = vmatprep.subr.mxu0 0.0
    %106 = vmatpush1.msra.mxu0 0.0
    %107 = vmatprep.subr.mxu0 0.0
    %108 = vmatpush1.msra.mxu0 0.0
    %109 = vmatprep.subr.mxu0 0.0
    %110 = vmatpush1.msra.mxu0 0.0
    %111 = vmatprep.subr.mxu0 0.0
    %112 = vmatpush1.msra.mxu0 0.0
    %113 = vmatprep.mubr.f32.mxu0 0.0
    %114 = vmatmul.mubr.f32.gmra.mrb[0].mxu0 %v47
    %v115 = vpop.f32.mrb[0].mxu0
    %v116 = vadd.f32 %v44, %v115
    %v117 = vpop.f32.mrb[0].mxu0
    %118 = vdwg.mxu0
    %v119 = vmul.f32 %v116, 0.01
    %v120 = vmax.f32 %v116, %v119
    %v121 = vld [vmem:[#allocation4 + $0x18] sm:$0xff]
    %v122 = vld [vmem:[#allocation4 + $0x20] sm:$0xff]
    %v123 = vld [vmem:[#allocation4 + $0x28] sm:$0xff]
    %v124 = vld [vmem:[#allocation4 + $0x30] sm:$0xff]
    %v125 = vld [vmem:[#allocation4 + $0x38] sm:$0xff]
    %v126 = vld [vmem:[#allocation4 + $0x40] sm:$0xff]
    %v127 = vld [vmem:[#allocation4 + $0x48] sm:$0xff]
    %v128 = vld [vmem:[#allocation4 + $0x50] sm:$0xff]
    %v129 = vld [vmem:[#allocation4 + $0x58] sm:$0x1]
    %v130 = vlaneseq
    %v131 = vshrl.u32 %v130, 7
    %v132 = vsub.s32 0, %v131
    %v133 = vrot.slane %v129, %v132
    %vm134 = vcmask 523264
    %v136 = vsel %vm134, %v120, 0
    %138 = vmatprep.subr.mxu0 0.0
    %139 = vmatpush1.msra.mxu0 %v121
    %140 = vmatprep.subr.mxu0 0.0
    %141 = vmatpush1.msra.mxu0 %v122
    %142 = vmatprep.subr.mxu0 0.0
    %143 = vmatpush1.msra.mxu0 %v123
    %144 = vmatprep.subr.mxu0 0.0
    %145 = vmatpush1.msra.mxu0 %v124
    %146 = vmatprep.subr.mxu0 0.0
    %147 = vmatpush1.msra.mxu0 %v125
    %148 = vmatprep.subr.mxu0 0.0
    %149 = vmatpush1.msra.mxu0 %v126
    %150 = vmatprep.subr.mxu0 0.0
    %151 = vmatpush1.msra.mxu0 %v127
    %152 = vmatprep.subr.mxu0 0.0
    %153 = vmatpush1.msra.mxu0 %v128
    %154 = vmatprep.subr.mxu0 0.0
    %155 = vmatpush1.msra.mxu0 0.0
    %156 = vmatprep.subr.mxu0 0.0
    %157 = vmatpush1.msra.mxu0 0.0
    %158 = vmatprep.subr.mxu0 0.0
    %159 = vmatpush1.msra.mxu0 0.0
    %160 = vmatprep.subr.mxu0 0.0
    %161 = vmatpush1.msra.mxu0 0.0
    %162 = vmatprep.subr.mxu0 0.0
    %163 = vmatpush1.msra.mxu0 0.0
    %164 = vmatprep.subr.mxu0 0.0
    %165 = vmatpush1.msra.mxu0 0.0
    %166 = vmatprep.subr.mxu0 0.0
    %167 = vmatpush1.msra.mxu0 0.0
    %168 = vmatprep.subr.mxu0 0.0
    %169 = vmatpush1.msra.mxu0 0.0
    %170 = vmatprep.subr.mxu0 0.0
    %171 = vmatpush1.msra.mxu0 0.0
    %172 = vmatprep.subr.mxu0 0.0
    %173 = vmatpush1.msra.mxu0 0.0
    %174 = vmatprep.subr.mxu0 0.0
    %175 = vmatpush1.msra.mxu0 0.0
    %176 = vmatprep.subr.mxu0 0.0
    %177 = vmatpush1.msra.mxu0 0.0
    %178 = vmatprep.subr.mxu0 0.0
    %179 = vmatpush1.msra.mxu0 0.0
    %180 = vmatprep.subr.mxu0 0.0
    %181 = vmatpush1.msra.mxu0 0.0
    %182 = vmatprep.subr.mxu0 0.0
    %183 = vmatpush1.msra.mxu0 0.0
    %184 = vmatprep.subr.mxu0 0.0
    %185 = vmatpush1.msra.mxu0 0.0
    %186 = vmatprep.subr.mxu0 0.0
    %187 = vmatpush1.msra.mxu0 0.0
    %188 = vmatprep.subr.mxu0 0.0
    %189 = vmatpush1.msra.mxu0 0.0
    %190 = vmatprep.subr.mxu0 0.0
    %191 = vmatpush1.msra.mxu0 0.0
    %192 = vmatprep.subr.mxu0 0.0
    %193 = vmatpush1.msra.mxu0 0.0
    %194 = vmatprep.subr.mxu0 0.0
    %195 = vmatpush1.msra.mxu0 0.0
    %196 = vmatprep.subr.mxu0 0.0
    %197 = vmatpush1.msra.mxu0 0.0
    %198 = vmatprep.subr.mxu0 0.0
    %199 = vmatpush1.msra.mxu0 0.0
    %200 = vmatprep.subr.mxu0 0.0
    %201 = vmatpush1.msra.mxu0 0.0
    %202 = vmatprep.mubr.f32.mxu0 0.0
    %203 = vmatmul.mubr.f32.gmra.mrb[0].mxu0 %v136
    %v204 = vpop.f32.mrb[0].mxu0
    %v205 = vadd.f32 %v133, %v204
    %v206 = vpop.f32.mrb[0].mxu0
    %207 = vdwg.mxu0
    %v208 = vmul.f32 %v205, 0.01
    %v209 = vmax.f32 %v205, %v208
    %v210 = vld [vmem:[#allocation4 + $0x60] sm:$0xff]
    %v211 = vld [vmem:[#allocation4 + $0x68] sm:$0xff]
    %v212 = vld [vmem:[#allocation4 + $0x70] sm:$0xff]
    %v213 = vld [vmem:[#allocation4 + $0x78] sm:$0xff]
    %v214 = vld [vmem:[#allocation4 + $0x80] sm:$0xff]
    %v215 = vld [vmem:[#allocation4 + $0x88] sm:$0xff]
    %v216 = vld [vmem:[#allocation4 + $0x90] sm:$0x1]
    %217 = vmatprep.subr.mxu0 0.0
    %218 = vmatpush1.msra.mxu0 %v214
    %219 = vmatprep.subr.mxu0 0.0
    %220 = vmatpush1.msra.mxu0 %v215
    %221 = vmatprep.subr.mxu0 0.0
    %222 = vmatpush1.msra.mxu0 0.0
    %223 = vmatprep.subr.mxu0 0.0
    %224 = vmatpush1.msra.mxu0 0.0
    %225 = vmatprep.subr.mxu0 0.0
    %226 = vmatpush1.msra.mxu0 0.0
    %227 = vmatprep.subr.mxu0 0.0
    %228 = vmatpush1.msra.mxu0 0.0
    %229 = vmatprep.subr.mxu0 0.0
    %230 = vmatpush1.msra.mxu0 0.0
    %231 = vmatprep.subr.mxu0 0.0
    %232 = vmatpush1.msra.mxu0 0.0
    %233 = vmatprep.subr.mxu0 0.0
    %234 = vmatpush1.msra.mxu0 0.0
    %235 = vmatprep.subr.mxu0 0.0
    %236 = vmatpush1.msra.mxu0 0.0
    %237 = vmatprep.subr.mxu0 0.0
    %238 = vmatpush1.msra.mxu0 0.0
    %239 = vmatprep.subr.mxu0 0.0
    %240 = vmatpush1.msra.mxu0 0.0
    %241 = vmatprep.subr.mxu0 0.0
    %242 = vmatpush1.msra.mxu0 0.0
    %243 = vmatprep.subr.mxu0 0.0
    %244 = vmatpush1.msra.mxu0 0.0
    %245 = vmatprep.subr.mxu0 0.0
    %246 = vmatpush1.msra.mxu0 0.0
    %247 = vmatprep.subr.mxu0 0.0
    %248 = vmatpush1.msra.mxu0 0.0
    %249 = vmatprep.subr.mxu0 0.0
    %250 = vmatpush1.msra.mxu0 0.0
    %251 = vmatprep.subr.mxu0 0.0
    %252 = vmatpush1.msra.mxu0 0.0
    %253 = vmatprep.subr.mxu0 0.0
    %254 = vmatpush1.msra.mxu0 0.0
    %255 = vmatprep.subr.mxu0 0.0
    %256 = vmatpush1.msra.mxu0 0.0
    %257 = vmatprep.subr.mxu0 0.0
    %258 = vmatpush1.msra.mxu0 0.0
    %259 = vmatprep.subr.mxu0 0.0
    %260 = vmatpush1.msra.mxu0 0.0
    %261 = vmatprep.subr.mxu0 0.0
    %262 = vmatpush1.msra.mxu0 0.0
    %263 = vmatprep.subr.mxu0 0.0
    %264 = vmatpush1.msra.mxu0 0.0
    %265 = vmatprep.subr.mxu0 0.0
    %266 = vmatpush1.msra.mxu0 0.0
    %267 = vmatprep.subr.mxu0 0.0
    %268 = vmatpush1.msra.mxu0 0.0
    %269 = vmatprep.subr.mxu0 0.0
    %270 = vmatpush1.msra.mxu0 0.0
    %271 = vmatprep.subr.mxu0 0.0
    %272 = vmatpush1.msra.mxu0 0.0
    %273 = vmatprep.subr.mxu0 0.0
    %274 = vmatpush1.msra.mxu0 0.0
    %275 = vmatprep.subr.mxu0 0.0
    %276 = vmatpush1.msra.mxu0 0.0
    %277 = vmatprep.subr.mxu0 0.0
    %278 = vmatpush1.msra.mxu0 0.0
    %279 = vmatprep.subr.mxu0 0.0
    %280 = vmatpush1.msra.mxu0 0.0
    %281 = vmatprep.mubr.f32.mxu0 0.0
    %282 = vmatmul.mubr.f32.gmra.mrb[0].mxu0 %v47
    %v283 = vpop.f32.mrb[0].mxu0
    %v284 = vadd.f32 0.0, %v283
    %v285 = vpop.f32.mrb[0].mxu0
    %286 = vdwg.mxu0
    %vm287 = vcmask 261120
    %v289 = vsel %vm287, %v209, 0
    %291 = vmatprep.subr.mxu0 0.0
    %292 = vmatpush1.msra.mxu0 %v210
    %293 = vmatprep.subr.mxu0 0.0
    %294 = vmatpush1.msra.mxu0 %v211
    %295 = vmatprep.subr.mxu0 0.0
    %296 = vmatpush1.msra.mxu0 %v212
    %297 = vmatprep.subr.mxu0 0.0
    %298 = vmatpush1.msra.mxu0 %v213
    %299 = vmatprep.subr.mxu0 0.0
    %300 = vmatpush1.msra.mxu0 0.0
    %301 = vmatprep.subr.mxu0 0.0
    %302 = vmatpush1.msra.mxu0 0.0
    %303 = vmatprep.subr.mxu0 0.0
    %304 = vmatpush1.msra.mxu0 0.0
    %305 = vmatprep.subr.mxu0 0.0
    %306 = vmatpush1.msra.mxu0 0.0
    %307 = vmatprep.subr.mxu0 0.0
    %308 = vmatpush1.msra.mxu0 0.0
    %309 = vmatprep.subr.mxu0 0.0
    %310 = vmatpush1.msra.mxu0 0.0
    %311 = vmatprep.subr.mxu0 0.0
    %312 = vmatpush1.msra.mxu0 0.0
    %313 = vmatprep.subr.mxu0 0.0
    %314 = vmatpush1.msra.mxu0 0.0
    %315 = vmatprep.subr.mxu0 0.0
    %316 = vmatpush1.msra.mxu0 0.0
    %317 = vmatprep.subr.mxu0 0.0
    %318 = vmatpush1.msra.mxu0 0.0
    %319 = vmatprep.subr.mxu0 0.0
    %320 = vmatpush1.msra.mxu0 0.0
    %321 = vmatprep.subr.mxu0 0.0
    %322 = vmatpush1.msra.mxu0 0.0
    %323 = vmatprep.subr.mxu0 0.0
    %324 = vmatpush1.msra.mxu0 0.0
    %325 = vmatprep.subr.mxu0 0.0
    %326 = vmatpush1.msra.mxu0 0.0
    %327 = vmatprep.subr.mxu0 0.0
    %328 = vmatpush1.msra.mxu0 0.0
    %329 = vmatprep.subr.mxu0 0.0
    %330 = vmatpush1.msra.mxu0 0.0
    %331 = vmatprep.subr.mxu0 0.0
    %332 = vmatpush1.msra.mxu0 0.0
    %333 = vmatprep.subr.mxu0 0.0
    %334 = vmatpush1.msra.mxu0 0.0
    %335 = vmatprep.subr.mxu0 0.0
    %336 = vmatpush1.msra.mxu0 0.0
    %337 = vmatprep.subr.mxu0 0.0
    %338 = vmatpush1.msra.mxu0 0.0
    %339 = vmatprep.subr.mxu0 0.0
    %340 = vmatpush1.msra.mxu0 0.0
    %341 = vmatprep.subr.mxu0 0.0
    %342 = vmatpush1.msra.mxu0 0.0
    %343 = vmatprep.subr.mxu0 0.0
    %344 = vmatpush1.msra.mxu0 0.0
    %345 = vmatprep.subr.mxu0 0.0
    %346 = vmatpush1.msra.mxu0 0.0
    %347 = vmatprep.subr.mxu0 0.0
    %348 = vmatpush1.msra.mxu0 0.0
    %349 = vmatprep.subr.mxu0 0.0
    %350 = vmatpush1.msra.mxu0 0.0
    %351 = vmatprep.subr.mxu0 0.0
    %352 = vmatpush1.msra.mxu0 0.0
    %353 = vmatprep.subr.mxu0 0.0
    %354 = vmatpush1.msra.mxu0 0.0
    %355 = vmatprep.mubr.f32.mxu0 0.0
    %356 = vmatmul.mubr.f32.gmra.mrb[0].mxu0 %v289
    %v357 = vpop.f32.mrb[0].mxu0
    %v358 = vadd.f32 %v284, %v357
    %v359 = vpop.f32.mrb[0].mxu0
    %360 = vdwg.mxu0
    %v361 = vlaneseq
    %v362 = vshrl.u32 %v361, 7
    %v363 = vsub.s32 0, %v362
    %v364 = vrot.slane %v216, %v363
    %v365 = vadd.f32 %v358, %v364
    %v366 = vlaneseq
    %v367 = vand.u32 %v366, 127
    %vm368 = vcmp.ge.s32.totalorder %v367, 8
    %v369 = vtanh.pop %v365
    %v370 = vsel %vm368, 1, 0
    %vm371 = vcmp.eq.s32.totalorder %v370, 1
    %v372 = vsel %vm371, %v369, %v365
    %373 = vst [vmem:[%s2] sm:$0xff] %v372
    // Predicated region
    $region18: #{actor_forward.1} parent=1 // pred_check
      _
    $region19: #{actor_forward.1} parent=1 // pred_check_branch
      %375 = sbr.rel (0) target = $region21
    $region20: #{actor_forward.1} parent=1 // pred_region
      _
    $region21: #{actor_forward.1} parent=1 // pred_fallthru
      _
    // Predicated region
    $region22: #{actor_forward.1} parent=1 // pred_check
      _
    $region23: #{actor_forward.1} parent=1 // pred_check_branch
      %377 = sbr.rel (0) target = $region25
    $region24: #{actor_forward.1} parent=1 // pred_region
      _
    $region25: #{actor_forward.1} parent=1 // pred_fallthru
      _
    %378 = vsyncpa [#allocation3], 1
    %379 = vsyncpa [#allocation5], 1

</llo_original>
